<compile_context>
chip_gen: v6e
topology: v6e:2x2x1
jax: 0.10.0
libtpu: 0.0.40
codegen_flags: <defaults>
</compile_context>

<pallas_src>
import numpy as np
import jax
import jax.numpy as jnp
from jax.experimental import pallas as pl
from jax.experimental.pallas import tpu as pltpu


def _round_up(x: int, m: int) -> int:
    return ((x + m - 1) // m) * m


def _interp_matrix_np(out_size: int, in_size: int) -> np.ndarray:
    """Row-stochastic (out_size, in_size) matrix M s.t. M @ x is 1-D linear
    interpolation of x with align_corners=True (identity when sizes match)."""
    m = np.zeros((out_size, in_size), dtype=np.float32)
    if in_size == 1:
        m[:, 0] = 1.0
        return m
    if out_size == 1:
        m[0, 0] = 1.0
        return m
    scale = (in_size - 1) / (out_size - 1)
    for i in range(out_size):
        src = i * scale
        lo = min(int(np.floor(src)), in_size - 2)
        frac = src - lo
        m[i, lo] += 1.0 - frac
        m[i, lo + 1] += frac
    return m


def _vmem_budget_bytes() -> int:
    """Usable VMEM budget per generation (~48 MiB on v7x, ~96 MiB on v5e/v6e)."""
    cap = 64 * 1024 * 1024
    try:
        cap = int(pltpu.get_tpu_info().vmem_capacity_bytes)
    except Exception:
        pass
    return max(min(cap * 3 // 4, cap - 16 * 1024 * 1024), 32 * 1024 * 1024)


def _pick_tile_rows(h: int, per_row_bytes: int, fixed_bytes: int,
                    budget_bytes: int) -> int:
    """Largest 8-aligned row tile (capped at 1024) whose double-buffered
    working set fits the VMEM budget, balanced to minimize padding waste."""
    h8 = _round_up(max(h, 1), 8)
    avail = max(budget_bytes - fixed_bytes, per_row_bytes * 8)
    th_cap = min(max(avail // max(per_row_bytes, 1), 8), 1024)
    if th_cap >= h8:
        return h8
    n_tiles = -(-h8 // th_cap)
    return min(_round_up(-(-h8 // n_tiles), 8), h8)


def _mse_same_kernel(warp_ref, ref_ref, out_ref):
    # warp_ref/ref_ref: (1, TH, Lp)  one batch element, one row tile,
    #                                channels folded into (zero-padded) lanes.
    # out_ref:          (1, 1, 1)    per-(batch, h-tile) partial sum of sq diffs
    d = warp_ref[0].astype(jnp.float32) - ref_ref[0].astype(jnp.float32)
    out_ref[...] = jnp.sum(d * d).reshape(1, 1, 1)


def _mse_interp_kernel(warp_ref, ref_ref, ah_ref, awt_ref, out_ref):
    # Channel-major layout: one (batch*channel) plane per step of grid axis 0.
    # warp_ref: (1, TH, Wp)     row tile of the query plane (zero-padded)
    # ref_ref:  (1, Hrp, Wrp)   whole reference plane (resident across h tiles)
    # ah_ref:   (TH, Hrp)       row-interp matrix tile
    # awt_ref:  (Wrp, Wp)       column-interp matrix (transposed), grid-invariant
    # out_ref:  (1, 1, 1)       per-(plane, h-tile) partial sum of sq diffs
    ref_plane = ref_ref[0].astype(ah_ref.dtype)
    tmp = jnp.dot(ah_ref[...], ref_plane,
                  preferred_element_type=jnp.float32)            # (TH, Wrp)
    ref_i = jnp.dot(tmp.astype(awt_ref.dtype), awt_ref[...],
                    preferred_element_type=jnp.float32)          # (TH, Wp)
    d = warp_ref[0].astype(jnp.float32) - ref_i
    out_ref[...] = jnp.sum(d * d).reshape(1, 1, 1)


def shape_averaging_loss(warp: jnp.ndarray, ref_warp: jnp.ndarray, *,
                         interp_in_bf16: bool = False) -> jnp.ndarray:
    """2D version of ShapeAveragingOperator.forward (dims == 2).

    warp: (N, H, W, C), ref_warp: (N, Hr, Wr, C).  Returns the f32 scalar
    mean((warp - resize(ref_warp, (H, W), bilinear, align_corners=True))**2).
    """
    # TODO(synk): only the dims==2 (bilinear) path is implemented; the 3D
    # trilinear path of the module is not covered here.
    N, H, W, C = warp.shape
    Nr, Hr, Wr, Cr = ref_warp.shape
    assert N == Nr and C == Cr, "batch / vector-dim mismatch"

    budget = _vmem_budget_bytes()
    in_isz = jnp.dtype(warp.dtype).itemsize
    denom = jnp.float32(N * H * W * C)

    if (H, W) == (Hr, Wr):
        # Identity case: no resize -> pure subtract-square-reduce, channels-last
        # (no wrapper transpose), no MXU work.
        L = W * C
        Lp = _round_up(L, 128)
        per_row = 4 * Lp * in_isz + 8 * Lp         # 2 inputs x 2 bufs + f32 temps
        th = _pick_tile_rows(H, per_row, 2 * 1024 * 1024, budget)
        n_h = -(-H // th)
        Hp = n_h * th

        warp2 = jnp.pad(warp.reshape(N, H, L), ((0, 0), (0, Hp - H), (0, Lp - L)))
        ref2 = jnp.pad(ref_warp.reshape(N, H, L), ((0, 0), (0, Hp - H), (0, Lp - L)))

        partials = pl.pallas_call(
            _mse_same_kernel,
            out_shape=jax.ShapeDtypeStruct((N * n_h, 1, 1), jnp.float32),
            grid_spec=pltpu.PrefetchScalarGridSpec(
                num_scalar_prefetch=0,
                grid=(N, n_h),
                in_specs=[
                    pl.BlockSpec((1, th, Lp), lambda n, h: (n, h, 0)),
                    pl.BlockSpec((1, th, Lp), lambda n, h: (n, h, 0)),
                ],
                out_specs=pl.BlockSpec((1, 1, 1), lambda n, h: (n * n_h + h, 0, 0)),
            ),
            compiler_params=pltpu.CompilerParams(
                dimension_semantics=("parallel", "parallel"),
                vmem_limit_bytes=budget),
        )(warp2, ref2)
    else:
        # Resize case, channel-major so the column interpolation is a plain
        # matmul (no kron(aw, I_C)^T: C^2 less weight VMEM, C x fewer FLOPs).
        use_bf16 = interp_in_bf16 or warp.dtype == jnp.bfloat16
        w_dtype = jnp.bfloat16 if use_bf16 else jnp.float32
        w_isz = jnp.dtype(w_dtype).itemsize

        NP = N * C
        Wp = _round_up(W, 128)
        Wrp = _round_up(Wr, 128)
        Hrp = _round_up(Hr, 8)

        # VMEM budget: ref + awT (both double-buffered by the default pipeline;
        # their index maps are h-invariant so they are not re-DMA'd per step)
        # are "fixed", warp/ah/temporaries scale with the row tile TH.
        fixed = 2 * Hrp * Wrp * in_isz + 2 * Wrp * Wp * w_isz + 2 * 1024 * 1024
        per_row = 2 * Wp * in_isz + 2 * Hrp * w_isz + 4 * (Wrp + 2 * Wp)
        th = _pick_tile_rows(H, per_row, fixed, budget)
        n_h = -(-H // th)
        Hp = n_h * th

        warp_cm = jnp.pad(jnp.transpose(warp, (0, 3, 1, 2)).reshape(NP, H, W),
                          ((0, 0), (0, Hp - H), (0, Wp - W)))
        ref_cm = jnp.pad(jnp.transpose(ref_warp, (0, 3, 1, 2)).reshape(NP, Hr, Wr),
                         ((0, 0), (0, Hrp - Hr), (0, Wrp - Wr)))

        # Zero-padded interpolation matrices (padded rows/cols contribute 0,
        # so padded output columns/rows of the diff are exactly 0).
        ah_np = np.zeros((Hp, Hrp), dtype=np.float32)
        ah_np[:H, :Hr] = _interp_matrix_np(H, Hr)
        awt_np = np.zeros((Wrp, Wp), dtype=np.float32)
        awt_np[:Wr, :W] = _interp_matrix_np(W, Wr).T
        ah = jnp.asarray(ah_np, dtype=w_dtype)
        awt = jnp.asarray(awt_np, dtype=w_dtype)

        partials = pl.pallas_call(
            _mse_interp_kernel,
            out_shape=jax.ShapeDtypeStruct((NP * n_h, 1, 1), jnp.float32),
            grid_spec=pltpu.PrefetchScalarGridSpec(
                num_scalar_prefetch=0,
                grid=(NP, n_h),   # plane-outer, h-inner: ref/awT resident over h
                in_specs=[
                    pl.BlockSpec((1, th, Wp), lambda b, h: (b, h, 0)),
                    pl.BlockSpec((1, Hrp, Wrp), lambda b, h: (b, 0, 0)),
                    pl.BlockSpec((th, Hrp), lambda b, h: (h, 0)),
                    # TODO(synk): single-buffer this grid-invariant matrix
                    # (pipeline_mode=pl.Buffered(1)); its 2x footprint is
                    # already charged to the TH budget above, so this is only
                    # a further VMEM saving, not a correctness issue.
                    pl.BlockSpec((Wrp, Wp), lambda b, h: (0, 0)),
                ],
                out_specs=pl.BlockSpec((1, 1, 1), lambda b, h: (b * n_h + h, 0, 0)),
            ),
            compiler_params=pltpu.CompilerParams(
                dimension_semantics=("parallel", "parallel"),
                vmem_limit_bytes=budget),
        )(warp_cm, ref_cm, ah, awt)

    return jnp.sum(partials) / denom


if __name__ == "__main__":
    key = jax.random.PRNGKey(0)
    k1, k2, k3 = jax.random.split(key, 3)

    N, C = 2, 2          # 2D warp -> 2 vector components
    H, W = 16, 16        # query warp spatial size
    Hr, Wr = 8, 8        # reference warp spatial size (triggers interpolation)

    ref_warp = jax.random.normal(k1, (N, Hr, Wr, C), dtype=jnp.float32)
    warp = jax.random.normal(k2, (N, H, W, C), dtype=jnp.float32)

    # --- case 1: shapes differ -> bilinear align_corners resize + MSE ---
    loss = shape_averaging_loss(warp, ref_warp)
    jax.block_until_ready(loss)

    # pure-JAX reference (same separable interpolation math, unpadded)
    ah = jnp.asarray(_interp_matrix_np(H, Hr))
    aw = jnp.asarray(_interp_matrix_np(W, Wr))
    ref_h = jnp.einsum("hk,nkwc->nhwc", ah, ref_warp)
    ref_i = jnp.einsum("wl,nhlc->nhwc", aw, ref_h)
    loss_ref = jnp.mean((warp - ref_i) ** 2)
    assert np.allclose(np.asarray(loss), np.asarray(loss_ref), rtol=1e-5, atol=1e-6), \
        (loss, loss_ref)

    # --- case 2: shapes match -> plain MSE (matmul-free fast path) ---
    warp_same = jax.random.normal(k3, (N, Hr, Wr, C), dtype=jnp.float32)
    loss_same = shape_averaging_loss(warp_same, ref_warp)
    jax.block_until_ready(loss_same)
    loss_same_ref = jnp.mean((warp_same - ref_warp) ** 2)
    assert np.allclose(np.asarray(loss_same), np.asarray(loss_same_ref),
                       rtol=1e-5, atol=1e-6), (loss_same, loss_same_ref)

    # --- case 3: bf16 interp-matmul option (f32 accumulation), loose check ---
    loss_bf16 = shape_averaging_loss(warp, ref_warp, interp_in_bf16=True)
    jax.block_until_ready(loss_bf16)
    assert np.isfinite(float(loss_bf16))
    assert abs(float(loss_bf16) - float(loss_ref)) < 5e-2 * max(float(loss_ref), 1.0), \
        (loss_bf16, loss_ref)

    print("KERNEL_OK")
</pallas_src>

<mosaic_0001>
module attributes {stable_mosaic.version = 11 : i64} {
  func.func @_mse_interp_kernel(%arg0: i32, %arg1: i32, %arg2: memref<1x16x128xf32, #tpu.memory_space<vmem>>, %arg3: memref<1x8x128xf32, #tpu.memory_space<vmem>>, %arg4: memref<16x8xf32, #tpu.memory_space<vmem>>, %arg5: memref<128x128xf32, #tpu.memory_space<vmem>>, %arg6: memref<1x1x1xf32, #tpu.memory_space<vmem>>) attributes {dimension_semantics = [#tpu.dimension_semantics<parallel>, #tpu.dimension_semantics<parallel>], iteration_bounds = array<i64: 4, 1>, scalar_prefetch = 0 : i64, scratch_operands = 0 : i64, tpu.core_type = #tpu.core_type<tc>, window_params = [{transform_indices = @transform_0, window_bounds = array<i64: 1, 16, 128>}, {transform_indices = @transform_1, window_bounds = array<i64: 1, 8, 128>}, {transform_indices = @transform_2, window_bounds = array<i64: 16, 8>}, {pipeline_mode = #tpu.pipeline_mode<synchronous>, transform_indices = @transform_3, window_bounds = array<i64: 128, 128>}, {transform_indices = @transform_4, window_bounds = array<i64: 1, 1, 1>}]} {
    %c0 = arith.constant 0 : index
    %c0_0 = arith.constant 0 : index
    %c0_1 = arith.constant 0 : index
    %0 = vector.load %arg3[%c0, %c0_0, %c0_1] : memref<1x8x128xf32, #tpu.memory_space<vmem>>, vector<1x8x128xf32>
    %1 = vector.shape_cast %0 : vector<1x8x128xf32> to vector<8x128xf32>
    %c0_2 = arith.constant 0 : index
    %c0_3 = arith.constant 0 : index
    %2 = vector.load %arg4[%c0_2, %c0_3] : memref<16x8xf32, #tpu.memory_space<vmem>>, vector<16x8xf32>
    %cst = arith.constant dense<0.000000e+00> : vector<16x128xf32>
    %3 = tpu.matmul %2, %1, %cst {dimension_numbers = #tpu.dot_dimension_numbers<[1], [0], [0], [1], [0, 0, 1, 1], [], []>} : vector<16x8xf32>, vector<8x128xf32>, vector<16x128xf32> -> vector<16x128xf32>
    %c0_4 = arith.constant 0 : index
    %c0_5 = arith.constant 0 : index
    %4 = vector.load %arg5[%c0_4, %c0_5] : memref<128x128xf32, #tpu.memory_space<vmem>>, vector<128x128xf32>
    %cst_6 = arith.constant dense<0.000000e+00> : vector<16x128xf32>
    %5 = tpu.matmul %3, %4, %cst_6 {dimension_numbers = #tpu.dot_dimension_numbers<[1], [0], [0], [1], [0, 0, 1, 1], [], []>} : vector<16x128xf32>, vector<128x128xf32>, vector<16x128xf32> -> vector<16x128xf32>
    %c0_7 = arith.constant 0 : index
    %c0_8 = arith.constant 0 : index
    %c0_9 = arith.constant 0 : index
    %6 = vector.load %arg2[%c0_7, %c0_8, %c0_9] : memref<1x16x128xf32, #tpu.memory_space<vmem>>, vector<1x16x128xf32>
    %7 = vector.shape_cast %6 : vector<1x16x128xf32> to vector<16x128xf32>
    %8 = arith.subf %7, %5 : vector<16x128xf32>
    %9 = arith.mulf %8, %8 : vector<16x128xf32>
    %10 = vector.shape_cast %9 : vector<16x128xf32> to vector<1x16x128xf32>
    %cst_10 = arith.constant dense<0.000000e+00> : vector<1xf32>
    %11 = vector.multi_reduction <add>, %10, %cst_10 [1, 2] : vector<1x16x128xf32> to vector<1xf32>
    %12 = vector.shape_cast %11 : vector<1xf32> to vector<1x1x1xf32>
    %13 = vector.extract %12[0, 0, 0] : f32 from vector<1x1x1xf32>
    %14 = vector.broadcast %13 : f32 to vector<1x1x1xf32>
    %c0_11 = arith.constant 0 : index
    %c0_12 = arith.constant 0 : index
    %c0_13 = arith.constant 0 : index
    %15 = vector.load %arg6[%c0_11, %c0_12, %c0_13] : memref<1x1x1xf32, #tpu.memory_space<vmem>>, vector<1x1x1xf32>
    tpu.vector_store %arg6[%c0_11, %c0_12, %c0_13], %14 {strides = array<i32>} : memref<1x1x1xf32, #tpu.memory_space<vmem>>, vector<1x1x1xf32>,
    return
  }
  func.func @transform_0(%arg0: i32, %arg1: i32) -> (i32, i32, i32) {
    %c0_i32 = arith.constant 0 : i32
    %c0_i32_0 = arith.constant 0 : i32
    return %arg0, %arg1, %c0_i32 : i32, i32, i32
  }
  func.func @transform_1(%arg0: i32, %arg1: i32) -> (i32, i32, i32) {
    %c0_i32 = arith.constant 0 : i32
    %c0_i32_0 = arith.constant 0 : i32
    %c0_i32_1 = arith.constant 0 : i32
    return %arg0, %c0_i32, %c0_i32_0 : i32, i32, i32
  }
  func.func @transform_2(%arg0: i32, %arg1: i32) -> (i32, i32) {
    %c0_i32 = arith.constant 0 : i32
    %c0_i32_0 = arith.constant 0 : i32
    return %arg1, %c0_i32 : i32, i32
  }
  func.func @transform_3(%arg0: i32, %arg1: i32) -> (i32, i32) {
    %c0_i32 = arith.constant 0 : i32
    %c0_i32_0 = arith.constant 0 : i32
    %c0_i32_1 = arith.constant 0 : i32
    return %c0_i32, %c0_i32_0 : i32, i32
  }
  func.func @transform_4(%arg0: i32, %arg1: i32) -> (i32, i32, i32) {
    %c1_i32 = arith.constant 1 : i32
    %0 = arith.muli %arg0, %c1_i32 : i32
    %1 = arith.addi %0, %arg1 : i32
    %c0_i32 = arith.constant 0 : i32
    %c0_i32_0 = arith.constant 0 : i32
    %c0_i32_1 = arith.constant 0 : i32
    return %1, %c0_i32, %c0_i32_0 : i32, i32, i32
  }
}

</mosaic_0001>

<llo_original>
// kernel: tpu_custom_call.1
$region0: #{tpu_custom_call.1}
  #allocation0 [shape = 'u32[]', space=smem, size = 0x4, offset = 0x4, fixed_abs, tag = 'smem constant byte address 0x4 - core index']
  #allocation1 [shape = 'u32[144,128]{1,0:T(1,128)}', space=vmem, size = 0x12000, scoped, tag = 'internal scratch']
  %s0 = inlined_call_operand.hbm [shape: f32[4,16,128], index: 0, kind: input, shape index: {}]
  %s1 = inlined_call_operand.hbm [shape: f32[4,8,128], index: 1, kind: input, shape index: {}]
  %s2 = inlined_call_operand.vmem [shape: f32[16,8], index: 2, kind: input, shape index: {}]
  %s3 = inlined_call_operand.hbm [shape: f32[128,128], index: 3, kind: input, shape index: {}]
  %s4 = inlined_call_operand.vmem [shape: f32[4,1,1], index: 4, kind: output, shape index: {}]
  %s5 = sld [smem:[#allocation0]]
  $region61: #{tpu_custom_call.1} parent=0
    _
  %s7 = ssub.s32 1, %s5
  %s8 = scalar_select 0, %s7, %s5
  $region1: #{tpu_custom_call.1} parent=0
    #allocation2 [shape = 'u8[16384]{0}', space=vmem, size = 0x4000, scoped, tag = 'input window, operand 0']
    #allocation3 [shape = 's32[2]{0}', space=sflag, size = 0x8, scoped, tag = 'scoped memory for tpu_custom_call.1']
    #allocation4 [shape = 'u8[8192]{0}', space=vmem, size = 0x2000, scoped, tag = 'input window, operand 1']
    #allocation5 [shape = 's32[2]{0}', space=sflag, size = 0x8, scoped, tag = 'scoped memory for tpu_custom_call.1']
    #allocation6 [shape = 'u8[65536]{0}', space=vmem, size = 0x10000, scoped, tag = 'input window, operand 3, single buffered']
    %9 = vsyncpa [#allocation3], 0
    %s10 = scalar_lea.sflag [#allocation3], 1
    %11 = vsyncpa %s10, 0
    %12 = vsyncpa [#allocation5], 0
    %s13 = scalar_lea.sflag [#allocation5], 1
    %14 = vsyncpa %s13, 0
    loop: start=0, step=1, limit=6
    $region2: #{tpu_custom_call.1} parent=1 // loop_pre_header
      _
    $region3: #{tpu_custom_call.1} parent=1 // loop_header
      %s16 = sphi 0, %s20
      %p17 = scmp.ge.s32.totalorder %s16, 6
      %s23 = sphi 0, %s35
      %s24 = sphi 0, %s31
      %s25 = sphi 0, %s23
      %s26 = sphi 0, %s24
      %s27 = sphi 0, %s25
      %s28 = sphi 0, %s26
      %s40 = sphi 0, %s42
      %s43 = sphi 0, %s40
      %s44 = sphi 0, %s43
      %s60 = sphi 0, %s44
      %s66 = sphi 0, %s68
      %s69 = sphi 0, %s66
      %s70 = sphi 0, %s69
      %s86 = sphi 0, %s70
      %s92 = sphi 0, %s94
      %s95 = sphi 0, %s92
      %s96 = sphi 0, %s95
      %s112 = sphi 0, %s96
      %s116 = sphi 0, %s116
      %s118 = sphi 0, %s116
      %s119 = sphi 0, %s118
      %s133 = sphi 0, %s119
      %s141 = sphi 0, %s143
      %s144 = sphi 0, %s141
      %s145 = sphi 0, %s144
      %s161 = sphi 0, %s145
    $region4: #{tpu_custom_call.1} parent=1 // loop_header_branch
      %19 = sbr.rel (%p17) target = $region8
    $region5: #{tpu_custom_call.1} parent=1 // loop_body
      %s21 = ssub.s32 %s16, 1
      %s22 = ssub.s32 %s16, 2
      %s29 = sadd.s32 1, %s24
      %p30 = scmp.ge.s32.totalorder %s29, 1
      %s31 = scalar_select %p30, 0, %s29
      %s32 = sadd.s32 1, %s23
      %s33 = scalar_select %p30, %s32, %s23
      %p34 = scmp.ge.s32.totalorder %s33, 4
      %s35 = scalar_select %p34, 0, %s33
      %s36 = ssub.s32 %s23, %s35
      %s37 = ssub.s32 %s24, %s31
      %s38 = sor.u32 %s36, %s37
      %p39 = scmp.eq.s32.totalorder %s38, 0
      %s41 = sadd.s32 %s40, 1
      %s42 = scalar_select %p39, %s40, %s41
      %p45 = pneg %p39
      %p46 = scmp.eq.s32.totalorder %s16, 3
      %p47 = por %p45, %p46
      %p48 = scmp.ne.s32.totalorder %s40, %s43
      %p49 = scmp.eq.s32.totalorder %s16, 0
      %p50 = por %p48, %p49
      %p51 = scmp.ne.s32.totalorder %s40, %s43
      %p52 = scmp.eq.s32.totalorder %s21, 3
      %p53 = por %p51, %p52
      %p54 = scmp.ne.s32.totalorder %s43, %s44
      %p55 = scmp.eq.s32.totalorder %s21, 0
      %p56 = por %p54, %p55
      %p57 = scmp.ne.s32.totalorder %s43, %s44
      %p58 = scmp.eq.s32.totalorder %s22, 3
      %p59 = por %p57, %p58
      %p61 = scmp.ne.s32.totalorder %s44, %s60
      %p62 = scmp.eq.s32.totalorder %s22, 0
      %p63 = por %p61, %p62
      %s64 = ssub.s32 %s23, %s35
      %p65 = scmp.eq.s32.totalorder %s64, 0
      %s67 = sadd.s32 %s66, 1
      %s68 = scalar_select %p65, %s66, %s67
      %p71 = pneg %p65
      %p72 = scmp.eq.s32.totalorder %s16, 3
      %p73 = por %p71, %p72
      %p74 = scmp.ne.s32.totalorder %s66, %s69
      %p75 = scmp.eq.s32.totalorder %s16, 0
      %p76 = por %p74, %p75
      %p77 = scmp.ne.s32.totalorder %s66, %s69
      %p78 = scmp.eq.s32.totalorder %s21, 3
      %p79 = por %p77, %p78
      %p80 = scmp.ne.s32.totalorder %s69, %s70
      %p81 = scmp.eq.s32.totalorder %s21, 0
      %p82 = por %p80, %p81
      %p83 = scmp.ne.s32.totalorder %s69, %s70
      %p84 = scmp.eq.s32.totalorder %s22, 3
      %p85 = por %p83, %p84
      %p87 = scmp.ne.s32.totalorder %s70, %s86
      %p88 = scmp.eq.s32.totalorder %s22, 0
      %p89 = por %p87, %p88
      %s90 = ssub.s32 %s24, %s31
      %p91 = scmp.eq.s32.totalorder %s90, 0
      %s93 = sadd.s32 %s92, 1
      %s94 = scalar_select %p91, %s92, %s93
      %p97 = pneg %p91
      %p98 = scmp.eq.s32.totalorder %s16, 3
      %p99 = por %p97, %p98
      %p100 = scmp.ne.s32.totalorder %s92, %s95
      %p101 = scmp.eq.s32.totalorder %s16, 0
      %p102 = por %p100, %p101
      %p103 = scmp.ne.s32.totalorder %s92, %s95
      %p104 = scmp.eq.s32.totalorder %s21, 3
      %p105 = por %p103, %p104
      %p106 = scmp.ne.s32.totalorder %s95, %s96
      %p107 = scmp.eq.s32.totalorder %s21, 0
      %p108 = por %p106, %p107
      %p109 = scmp.ne.s32.totalorder %s95, %s96
      %p110 = scmp.eq.s32.totalorder %s22, 3
      %p111 = por %p109, %p110
      %p113 = scmp.ne.s32.totalorder %s96, %s112
      %p114 = scmp.eq.s32.totalorder %s22, 0
      %p115 = por %p113, %p114
      %s117 = sadd.s32 %s116, 1
      %p120 = scmp.eq.s32.totalorder %s16, 3
      %p121 = scmp.ne.s32.totalorder %s116, %s118
      %p122 = scmp.eq.s32.totalorder %s16, 0
      %p123 = por %p121, %p122
      %p124 = scmp.ne.s32.totalorder %s116, %s118
      %p125 = scmp.eq.s32.totalorder %s21, 3
      %p126 = por %p124, %p125
      %p127 = scmp.ne.s32.totalorder %s118, %s119
      %p128 = scmp.eq.s32.totalorder %s21, 0
      %p129 = por %p127, %p128
      %p130 = scmp.ne.s32.totalorder %s118, %s119
      %p131 = scmp.eq.s32.totalorder %s22, 3
      %p132 = por %p130, %p131
      %p134 = scmp.ne.s32.totalorder %s119, %s133
      %p135 = scmp.eq.s32.totalorder %s22, 0
      %p136 = por %p134, %p135
      %s137 = sadd.s32 %s23, %s24
      %s138 = sadd.s32 %s35, %s31
      %s139 = ssub.s32 %s137, %s138
      %p140 = scmp.eq.s32.totalorder %s139, 0
      %s142 = sadd.s32 %s141, 1
      %s143 = scalar_select %p140, %s141, %s142
      %p146 = pneg %p140
      %p147 = scmp.eq.s32.totalorder %s16, 3
      %p148 = por %p146, %p147
      %p149 = scmp.ne.s32.totalorder %s141, %s144
      %p150 = scmp.eq.s32.totalorder %s16, 0
      %p151 = por %p149, %p150
      %p152 = scmp.ne.s32.totalorder %s141, %s144
      %p153 = scmp.eq.s32.totalorder %s21, 3
      %p154 = por %p152, %p153
      %p155 = scmp.ne.s32.totalorder %s144, %s145
      %p156 = scmp.eq.s32.totalorder %s21, 0
      %p157 = por %p155, %p156
      %p158 = scmp.ne.s32.totalorder %s144, %s145
      %p159 = scmp.eq.s32.totalorder %s22, 3
      %p160 = por %p158, %p159
      %p162 = scmp.ne.s32.totalorder %s145, %s161
      %p163 = scmp.eq.s32.totalorder %s22, 0
      %p164 = por %p162, %p163
      %p165 = scmp.le.s32.totalorder 1, %s16
      %p166 = scmp.lt.s32.totalorder %s16, 5
      %p167 = pnand %p165, %p166
      %p168 = pneg %p167
      // Predicated region
      $region9: #{tpu_custom_call.1} parent=5 // pred_check
        _
      $region10: #{tpu_custom_call.1} parent=5 // pred_check_branch
        %170 = sbr.rel (%p167) target = $region12
      $region11: #{tpu_custom_call.1} parent=5 // pred_region
        %s171 = ssub.s32 %s16, 1
        // Predicated region
        $region13: #{tpu_custom_call.1} parent=11 // pred_check
          %p172 = pneg %p108
        $region14: #{tpu_custom_call.1} parent=11 // pred_check_branch
          %174 = sbr.rel (%p172) target = $region16
        $region15: #{tpu_custom_call.1} parent=11 // pred_region
          %s175 = smul.u32 2, %s26
          %p176 = scmp.lt.s32.totalorder %s175, 1
          %s177 = scalar_select %p176, %s175, 1
          %s178 = smul.addr %s177, 8
          %s179 = scalar_lea.vmem %s2, %s178
          %s180 = smul.u32 2, %s26
        $region16: #{tpu_custom_call.1} parent=11 // pred_fallthru
          _
        // Predicated region
        $region17: #{tpu_custom_call.1} parent=11 // pred_check
          %p181 = pneg %p129
        $region18: #{tpu_custom_call.1} parent=11 // pred_check_branch
          %183 = sbr.rel (%p181) target = $region20
        $region19: #{tpu_custom_call.1} parent=11 // pred_region
          %s185 = ssub.s32 2048, 2048
          %186 = vsyncadd [#allocation5], %s185
          %s187 = sshll.u32 [#allocation6], 4
          %s188 = int_to_ptr.vmem [resolvable:$true] %s187
          %193 = dma.hbm_to_vmem [thread:$0]  %s3, 2048, %s188, [#allocation5], 128, 128, 8
        $region20: #{tpu_custom_call.1} parent=11 // pred_fallthru
          _
      $region12: #{tpu_custom_call.1} parent=5 // pred_fallthru
        _
      %p194 = scmp.lt.s32.totalorder %s16, 4
      // Predicated region
      $region21: #{tpu_custom_call.1} parent=5 // pred_check
        %p195 = pneg %p194
      $region22: #{tpu_custom_call.1} parent=5 // pred_check_branch
        %197 = sbr.rel (%p195) target = $region24
      $region23: #{tpu_custom_call.1} parent=5 // pred_region
        // Predicated region
        $region25: #{tpu_custom_call.1} parent=23 // pred_check
          %p198 = pneg %p50
        $region26: #{tpu_custom_call.1} parent=23 // pred_check_branch
          %200 = sbr.rel (%p198) target = $region28
        $region27: #{tpu_custom_call.1} parent=23 // pred_region
          %s201 = sand.u32 %s40, 1
          %s202 = scalar_lea.sflag [#allocation3], %s201
          %s203 = sand.u32 %s40, 1
          %s204 = smul.addr %s203, 16
          %s205 = scalar_lea.vmem [#allocation2], %s204
          %s206 = smul.u32 2, %s24
          %s208 = ssub.s32 256, 256
          %209 = vsyncadd %s202, %s208
          %s210 = smul.addr %s23, 2
          %s211 = sadd.s32 %s206, %s210
          %s212 = smul.addr %s211, 128
          %s213 = scalar_lea.hbm %s0, %s212
          %s214 = sshll.u32 %s205, 4
          %s215 = int_to_ptr.vmem [resolvable:$true] %s214
          %220 = dma.hbm_to_vmem [thread:$0]  %s213, 256, %s215, %s202, 128, 128, 8
        $region28: #{tpu_custom_call.1} parent=23 // pred_fallthru
          _
        // Predicated region
        $region29: #{tpu_custom_call.1} parent=23 // pred_check
          %p221 = pneg %p76
        $region30: #{tpu_custom_call.1} parent=23 // pred_check_branch
          %223 = sbr.rel (%p221) target = $region32
        $region31: #{tpu_custom_call.1} parent=23 // pred_region
          %s224 = sand.u32 %s16, 1
          %s225 = scalar_lea.sflag [#allocation5], %s224
          %s226 = sand.u32 %s66, 1
          %s227 = smul.addr %s226, 8
          %s228 = scalar_lea.vmem [#allocation4], %s227
          %s230 = ssub.s32 128, 128
          %231 = vsyncadd %s225, %s230
          %s232 = smul.addr %s23, 128
          %s233 = scalar_lea.hbm %s1, %s232
          %s235 = sshll.u32 %s228, 4
          %s236 = int_to_ptr.vmem [resolvable:$true] %s235
          %238 = dma.hbm_to_vmem [thread:$0]  %s233, 128, %s236, %s225
        $region32: #{tpu_custom_call.1} parent=23 // pred_fallthru
          _
      $region24: #{tpu_custom_call.1} parent=5 // pred_fallthru
        _
      %p239 = scmp.le.s32.totalorder 1, %s16
      %p240 = scmp.lt.s32.totalorder %s16, 5
      %p241 = pnand %p239, %p240
      %p242 = pneg %p241
      // Predicated region
      $region33: #{tpu_custom_call.1} parent=5 // pred_check
        _
      $region34: #{tpu_custom_call.1} parent=5 // pred_check_branch
        %244 = sbr.rel (%p241) target = $region36
      $region35: #{tpu_custom_call.1} parent=5 // pred_region
        %s245 = ssub.s32 %s16, 1
        %s246 = sand.u32 %s43, 1
        %s247 = scalar_lea.sflag [#allocation3], %s246
        %s248 = sand.u32 %s43, 1
        %s249 = smul.addr %s248, 16
        %s250 = scalar_lea.vmem [#allocation2], %s249
        // Predicated region
        $region37: #{tpu_custom_call.1} parent=35 // pred_check
          %p251 = pneg %p56
        $region38: #{tpu_custom_call.1} parent=35 // pred_check_branch
          %253 = sbr.rel (%p251) target = $region40
        $region39: #{tpu_custom_call.1} parent=35 // pred_region
          %254 = dma.done %s247, 256
        $region40: #{tpu_custom_call.1} parent=35 // pred_fallthru
          _
        %s255 = sand.u32 %s21, 1
        %s256 = scalar_lea.sflag [#allocation5], %s255
        %s257 = sand.u32 %s69, 1
        %s258 = smul.addr %s257, 8
        %s259 = scalar_lea.vmem [#allocation4], %s258
        // Predicated region
        $region41: #{tpu_custom_call.1} parent=35 // pred_check
          %p260 = pneg %p82
        $region42: #{tpu_custom_call.1} parent=35 // pred_check_branch
          %262 = sbr.rel (%p260) target = $region44
        $region43: #{tpu_custom_call.1} parent=35 // pred_region
          %263 = dma.done %s256, 128
        $region44: #{tpu_custom_call.1} parent=35 // pred_fallthru
          _
        // Predicated region
        $region45: #{tpu_custom_call.1} parent=35 // pred_check
          %p264 = pneg %p129
        $region46: #{tpu_custom_call.1} parent=35 // pred_check_branch
          %266 = sbr.rel (%p264) target = $region48
        $region47: #{tpu_custom_call.1} parent=35 // pred_region
          %267 = dma.done [#allocation5], 2048
        $region48: #{tpu_custom_call.1} parent=35 // pred_fallthru
          _
        %s268 = sand.u32 %s43, 1
        %s269 = scalar_lea.sflag [#allocation3], %s268
        %s270 = sand.u32 %s43, 1
        %s271 = smul.addr %s270, 16
        %s272 = scalar_lea.vmem [#allocation2], %s271
        %p273 = pneg %p56
        %p274 = pneg %p53
        %s275 = sand.u32 %s21, 1
        %s276 = scalar_lea.sflag [#allocation5], %s275
        %s277 = sand.u32 %s69, 1
        %s278 = smul.addr %s277, 8
        %s279 = scalar_lea.vmem [#allocation4], %s278
        %p280 = pneg %p82
        %p281 = pneg %p79
        %s282 = smul.u32 2, %s26
        %p283 = scmp.lt.s32.totalorder %s282, 1
        %s284 = scalar_select %p283, %s282, 1
        %s285 = smul.addr %s284, 8
        %s286 = scalar_lea.vmem %s2, %s285
        %p287 = pneg %p108
        %p288 = pneg %p105
        %p289 = pneg %p129
        %p290 = pneg %p126
        %p291 = pneg %p157
        %p292 = pneg %p154
        %s293 = sadd.s32 %s25, %s26
        %p294 = scmp.lt.s32.totalorder %s293, 3
        %s295 = scalar_select %p294, %s293, 3
        %s296 = scalar_lea.vmem %s4, %s295
        %s297 = smul.u32 2, %s26
        %s298 = smul.u32 2, %s26
        %p299 = scmp.lt.s32.totalorder %s298, 1
        %s300 = scalar_select %p299, %s298, 1
        %s301 = smul.addr %s300, 8
        %s302 = scalar_lea.vmem %s2, %s301
        %s303 = smul.u32 2, %s26
        %s304 = sadd.s32 %s25, %s26
        %p305 = scmp.lt.s32.totalorder %s304, 3
        %s306 = scalar_select %p305, %s304, 3
        %s307 = scalar_lea.vmem %s4, %s306
        %s308 = sadd.s32 %s25, %s26
        %v309 = vld [vmem:[%s259] sm:$0xff]
        %v310 = vld [vmem:[%s302] sm:$0xff]
        %v311 = vld [vmem:[%s302 + $0x8] sm:$0xff]
        %vm312 = vcmask 64512
        %v314 = vsel %vm312, %v310, 0
        %v317 = vsel %vm312, %v311, 0
        %319 = vmatprep.subr.mxu0 0.0
        %320 = vmatpush1.msra.mxu0 0.0
        %321 = vmatprep.subr.mxu0 0.0
        %322 = vmatpush1.msra.mxu0 0.0
        %323 = vmatprep.subr.mxu0 0.0
        %324 = vmatpush1.msra.mxu0 0.0
        %325 = vmatprep.subr.mxu0 0.0
        %326 = vmatpush1.msra.mxu0 0.0
        %327 = vmatprep.subr.mxu0 0.0
        %328 = vmatpush1.msra.mxu0 0.0
        %329 = vmatprep.subr.mxu0 0.0
        %330 = vmatpush1.msra.mxu0 0.0
        %331 = vmatprep.subr.mxu0 0.0
        %332 = vmatpush1.msra.mxu0 0.0
        %333 = vmatprep.subr.mxu0 0.0
        %334 = vmatpush1.msra.mxu0 0.0
        %335 = vmatprep.subr.mxu0 0.0
        %336 = vmatpush1.msra.mxu0 0.0
        %337 = vmatprep.subr.mxu0 0.0
        %338 = vmatpush1.msra.mxu0 0.0
        %339 = vmatprep.subr.mxu0 0.0
        %340 = vmatpush1.msra.mxu0 0.0
        %341 = vmatprep.subr.mxu0 0.0
        %342 = vmatpush1.msra.mxu0 0.0
        %343 = vmatprep.subr.mxu0 0.0
        %344 = vmatpush1.msra.mxu0 0.0
        %345 = vmatprep.subr.mxu0 0.0
        %346 = vmatpush1.msra.mxu0 0.0
        %347 = vmatprep.subr.mxu0 0.0
        %348 = vmatpush1.msra.mxu0 0.0
        %349 = vmatprep.subr.mxu0 0.0
        %350 = vmatpush1.msra.mxu0 %v309
        %351 = vmatprep.subr.mxu0 0.0
        %352 = vmatpush2.msra.mxu0 0.0
        %353 = vmatprep.subr.mxu0 0.0
        %354 = vmatpush2.msra.mxu0 0.0
        %355 = vmatprep.subr.mxu0 0.0
        %356 = vmatpush2.msra.mxu0 0.0
        %357 = vmatprep.subr.mxu0 0.0
        %358 = vmatpush2.msra.mxu0 0.0
        %359 = vmatprep.subr.mxu0 0.0
        %360 = vmatpush2.msra.mxu0 0.0
        %361 = vmatprep.subr.mxu0 0.0
        %362 = vmatpush2.msra.mxu0 0.0
        %363 = vmatprep.subr.mxu0 0.0
        %364 = vmatpush2.msra.mxu0 0.0
        %365 = vmatprep.subr.mxu0 0.0
        %366 = vmatpush2.msra.mxu0 0.0
        %367 = vmatprep.subr.mxu0 0.0
        %368 = vmatpush2.msra.mxu0 0.0
        %369 = vmatprep.subr.mxu0 0.0
        %370 = vmatpush2.msra.mxu0 0.0
        %371 = vmatprep.subr.mxu0 0.0
        %372 = vmatpush2.msra.mxu0 0.0
        %373 = vmatprep.subr.mxu0 0.0
        %374 = vmatpush2.msra.mxu0 0.0
        %375 = vmatprep.subr.mxu0 0.0
        %376 = vmatpush2.msra.mxu0 0.0
        %377 = vmatprep.subr.mxu0 0.0
        %378 = vmatpush2.msra.mxu0 0.0
        %379 = vmatprep.subr.mxu0 0.0
        %380 = vmatpush2.msra.mxu0 0.0
        %381 = vmatprep.subr.mxu0 0.0
        %382 = vmatpush2.msra.mxu0 0.0
        %383 = vmatprep.mubr.f32.mxu0 0.0
        %384 = vmatmul.mubr.f32.gmra.mxu0 %v314
        %v385 = vpop.f32.mrf.mxu0
        %v386 = vadd.f32 0.0, %v385
        %v387 = vpop.f32.mrf.mxu0
        %388 = vmatprep.mubr.f32.mxu0 0.0
        %389 = vmatmul.mubr.f32.gmra.mxu0 %v317
        %v390 = vpop.f32.mrf.mxu0
        %v391 = vadd.f32 0.0, %v390
        %v392 = vpop.f32.mrf.mxu0
        %393 = vdwg.mxu0
        %v394 = vld [vmem:[#allocation6] sm:$0xff]
        %v395 = vld [vmem:[#allocation6 + $0x8] sm:$0xff]
        %v396 = vld [vmem:[#allocation6 + $0x10] sm:$0xff]
        %v397 = vld [vmem:[#allocation6 + $0x18] sm:$0xff]
        %v398 = vld [vmem:[#allocation6 + $0x20] sm:$0xff]
        %v399 = vld [vmem:[#allocation6 + $0x28] sm:$0xff]
        %v400 = vld [vmem:[#allocation6 + $0x30] sm:$0xff]
        %v401 = vld [vmem:[#allocation6 + $0x38] sm:$0xff]
        %v402 = vld [vmem:[#allocation6 + $0x40] sm:$0xff]
        %v403 = vld [vmem:[#allocation6 + $0x48] sm:$0xff]
        %v404 = vld [vmem:[#allocation6 + $0x50] sm:$0xff]
        %v405 = vld [vmem:[#allocation6 + $0x58] sm:$0xff]
        %v406 = vld [vmem:[#allocation6 + $0x60] sm:$0xff]
        %v407 = vld [vmem:[#allocation6 + $0x68] sm:$0xff]
        %v408 = vld [vmem:[#allocation6 + $0x70] sm:$0xff]
        %v409 = vld [vmem:[#allocation6 + $0x78] sm:$0xff]
        %410 = vmatprep.subr.mxu0 0.0
        %411 = vmatpush1.msra.mxu0 %v409
        %412 = vmatprep.subr.mxu0 0.0
        %413 = vmatpush1.msra.mxu0 %v408
        %414 = vmatprep.subr.mxu0 0.0
        %415 = vmatpush1.msra.mxu0 %v407
        %416 = vmatprep.subr.mxu0 0.0
        %417 = vmatpush1.msra.mxu0 %v406
        %418 = vmatprep.subr.mxu0 0.0
        %419 = vmatpush1.msra.mxu0 %v405
        %420 = vmatprep.subr.mxu0 0.0
        %421 = vmatpush1.msra.mxu0 %v404
        %422 = vmatprep.subr.mxu0 0.0
        %423 = vmatpush1.msra.mxu0 %v403
        %424 = vmatprep.subr.mxu0 0.0
        %425 = vmatpush1.msra.mxu0 %v402
        %426 = vmatprep.subr.mxu0 0.0
        %427 = vmatpush1.msra.mxu0 %v401
        %428 = vmatprep.subr.mxu0 0.0
        %429 = vmatpush1.msra.mxu0 %v400
        %430 = vmatprep.subr.mxu0 0.0
        %431 = vmatpush1.msra.mxu0 %v399
        %432 = vmatprep.subr.mxu0 0.0
        %433 = vmatpush1.msra.mxu0 %v398
        %434 = vmatprep.subr.mxu0 0.0
        %435 = vmatpush1.msra.mxu0 %v397
        %436 = vmatprep.subr.mxu0 0.0
        %437 = vmatpush1.msra.mxu0 %v396
        %438 = vmatprep.subr.mxu0 0.0
        %439 = vmatpush1.msra.mxu0 %v395
        %440 = vmatprep.subr.mxu0 0.0
        %441 = vmatpush1.msra.mxu0 %v394
        %442 = vmatprep.subr.mxu0 0.0
        %443 = vmatpush2.msra.mxu0 0.0
        %444 = vmatprep.subr.mxu0 0.0
        %445 = vmatpush2.msra.mxu0 0.0
        %446 = vmatprep.subr.mxu0 0.0
        %447 = vmatpush2.msra.mxu0 0.0
        %448 = vmatprep.subr.mxu0 0.0
        %449 = vmatpush2.msra.mxu0 0.0
        %450 = vmatprep.subr.mxu0 0.0
        %451 = vmatpush2.msra.mxu0 0.0
        %452 = vmatprep.subr.mxu0 0.0
        %453 = vmatpush2.msra.mxu0 0.0
        %454 = vmatprep.subr.mxu0 0.0
        %455 = vmatpush2.msra.mxu0 0.0
        %456 = vmatprep.subr.mxu0 0.0
        %457 = vmatpush2.msra.mxu0 0.0
        %458 = vmatprep.subr.mxu0 0.0
        %459 = vmatpush2.msra.mxu0 0.0
        %460 = vmatprep.subr.mxu0 0.0
        %461 = vmatpush2.msra.mxu0 0.0
        %462 = vmatprep.subr.mxu0 0.0
        %463 = vmatpush2.msra.mxu0 0.0
        %464 = vmatprep.subr.mxu0 0.0
        %465 = vmatpush2.msra.mxu0 0.0
        %466 = vmatprep.subr.mxu0 0.0
        %467 = vmatpush2.msra.mxu0 0.0
        %468 = vmatprep.subr.mxu0 0.0
        %469 = vmatpush2.msra.mxu0 0.0
        %470 = vmatprep.subr.mxu0 0.0
        %471 = vmatpush2.msra.mxu0 0.0
        %472 = vmatprep.subr.mxu0 0.0
        %473 = vmatpush2.msra.mxu0 0.0
        %474 = vmatprep.mubr.f32.mxu0 0.0
        %475 = vmatmul.mubr.f32.gmra.mxu0 %v386
        %v476 = vpop.f32.mrf.mxu0
        %v477 = vadd.f32 0.0, %v476
        %v478 = vpop.f32.mrf.mxu0
        %479 = vmatprep.mubr.f32.mxu0 0.0
        %480 = vmatmul.mubr.f32.gmra.mxu0 %v391
        %v481 = vpop.f32.mrf.mxu0
        %v482 = vadd.f32 0.0, %v481
        %v483 = vpop.f32.mrf.mxu0
        %484 = vdwg.mxu0
        %v485 = vld [vmem:[%s250] sm:$0xff]
        %v486 = vld [vmem:[%s250 + $0x8] sm:$0xff]
        %v487 = vsub.f32 %v485, %v477
        %v488 = vsub.f32 %v486, %v482
        %v489 = vmul.f32 %v487, %v487
        %v490 = vmul.f32 %v488, %v488
        %v491 = vadd.f32 %v489, %v490
        %492 = vadd.xlane.f32.xlu0 %v491
        %v493 = vpop.xlane.xlu0 %492
        %v494 = vrot.slane %v493, 4
        %v495 = vadd.f32 %v493, %v494
        %v496 = vrot.slane %v495, 2
        %v497 = vadd.f32 %v495, %v496
        %v498 = vrot.slane %v497, 1
        %v499 = vadd.f32 %v497, %v498
        %s500 = vtos %v499
        %v501 = vstv %s500
        %vm502 = vcmask 0
        %503 = vst.msk [vmem:[%s307] sm:$0x1] %vm502, %v501
        %s504 = sadd.s32 %s25, %s26
        %p505 = scmp.lt.s32.totalorder %s504, 3
        %s506 = scalar_select %p505, %s504, 3
        %s507 = scalar_lea.vmem %s4, %s506
        // Predicated region
        $region49: #{tpu_custom_call.1} parent=35 // pred_check
          %p508 = pneg %p154
        $region50: #{tpu_custom_call.1} parent=35 // pred_check_branch
          %510 = sbr.rel (%p508) target = $region52
        $region51: #{tpu_custom_call.1} parent=35 // pred_region
          %s511 = sadd.s32 %s25, %s26
        $region52: #{tpu_custom_call.1} parent=35 // pred_fallthru
          _
      $region36: #{tpu_custom_call.1} parent=5 // pred_fallthru
        _
      %p512 = scmp.le.s32.totalorder 2, %s16
      // Predicated region
      $region53: #{tpu_custom_call.1} parent=5 // pred_check
        %p513 = pneg %p512
      $region54: #{tpu_custom_call.1} parent=5 // pred_check_branch
        %515 = sbr.rel (%p513) target = $region56
      $region55: #{tpu_custom_call.1} parent=5 // pred_region
        %s516 = ssub.s32 %s16, 2
        // Predicated region
        $region57: #{tpu_custom_call.1} parent=55 // pred_check
          %p517 = pneg %p160
        $region58: #{tpu_custom_call.1} parent=55 // pred_check_branch
          %519 = sbr.rel (%p517) target = $region60
        $region59: #{tpu_custom_call.1} parent=55 // pred_region
          %s520 = sadd.s32 %s27, %s28
          %p521 = scmp.lt.s32.totalorder %s520, 3
          %s522 = scalar_select %p521, %s520, 3
          %s523 = scalar_lea.vmem %s4, %s522
        $region60: #{tpu_custom_call.1} parent=55 // pred_fallthru
          _
      $region56: #{tpu_custom_call.1} parent=5 // pred_fallthru
        _
    $region6: #{tpu_custom_call.1} parent=1 // loop_footer
      %s20 = sadd.s32 1, %s16
    $region7: #{tpu_custom_call.1} parent=1 // loop_footer_branch
      %15 = sbr.rel target = $region3
    $region8: #{tpu_custom_call.1} parent=1 // loop_exit
      _
    %524 = vsyncpa [#allocation3], 1
    %s525 = scalar_lea.sflag [#allocation3], 1
    %526 = vsyncpa %s525, 1
    %527 = vsyncpa [#allocation5], 1
    %s528 = scalar_lea.sflag [#allocation5], 1
    %529 = vsyncpa %s528, 1

</llo_original>
